<compile_context>
chip_gen: v7x
topology: tpu7x:2x2x1
jax: 0.10.0
libtpu: 0.0.40
codegen_flags: <defaults>
</compile_context>

<pallas_src>
import functools

import jax
import jax.numpy as jnp
from jax import lax
from jax.experimental import pallas as pl
from jax.experimental.pallas import tpu as pltpu


def _round_up(x, m):
    return -(-x // m) * m


def lstm_mlp_kernel(ids_ref, w_ref, b_ref, out_ref, *,
                    seq_len, batch, hidden, vocab_pad):
    """Fused embedding+input-proj gather, LSTM recurrence and MLP head.

    ids_ref: (S*B, 1)      int32 token ids (t-major, b-minor)
    w_ref  : (Vp+2H+4H, W) bf16 packed weight slab, W = 4H lanes:
               rows [0, Vp)        : emb @ W_ih^T + (b_ih+b_hh)   (bias folded)
               rows [Vp, Vp+H)     : W_hh^T
               rows [Vp+H, Vp+2H)  : fc1 weight^T, lane-padded to W
               rows [Vp+2H, +W)    : fc2 weight^T, row/lane-padded to (W, W)
    b_ref  : (2, W) f32    row 0 = fc1 bias (padded), row 1 = fc2 bias (padded)
    out_ref: (B, W) f32    lane-dense output (first num_classes lanes valid)
    """
    S, B, H = seq_len, batch, hidden
    W = 4 * H
    Vp = vocab_pad
    SB = S * B

    # Static row offsets into the packed slab (all multiples of 16 -> no
    # bf16 sublane-tile-crossing slices).
    o_emb = 0
    o_whh = o_emb + Vp
    o_w1 = o_whh + H
    o_w2 = o_w1 + H

    # ---- fused embedding gather + input projection (+ folded LSTM bias) ----
    ids = ids_ref[...]                                          # (SB, 1) int32
    vocab_iota = lax.broadcasted_iota(jnp.int32, (SB, Vp), 1)
    onehot = (ids == vocab_iota).astype(jnp.bfloat16)           # (SB, Vp)
    xproj = jnp.dot(onehot, w_ref[o_emb:o_emb + Vp, :],
                    preferred_element_type=jnp.float32)         # (SB, W)

    whh = w_ref[o_whh:o_whh + H, :]                             # (H, W)  bf16
    w1p = w_ref[o_w1:o_w1 + H, :]                               # (H, W)  bf16
    w2p = w_ref[o_w2:o_w2 + W, :]                               # (W, W)  bf16
    b1 = b_ref[0:1, :]                                          # (1, W)  f32
    b2 = b_ref[1:2, :]                                          # (1, W)  f32

    # Lane mask selecting the g-gate columns [2H, 3H) (hoisted out of loop).
    lane = lax.broadcasted_iota(jnp.int32, (B, W), 1)
    g_mask = (lane >= 2 * H) & (lane < 3 * H)

    h = jnp.zeros((B, H), jnp.float32)
    c = jnp.zeros((B, H), jnp.float32)

    # Fully unrolled recurrence (S is small and static).
    for t in range(S):
        gates = xproj[t * B:(t + 1) * B, :] + jnp.dot(
            h.astype(jnp.bfloat16), whh,
            preferred_element_type=jnp.float32)                 # (B, W) f32
        # Single transcendental per step: sigmoid(x) = 0.5*(1 + tanh(x/2)).
        pre = jnp.where(g_mask, gates, 0.5 * gates)
        th = jnp.tanh(pre)
        act = jnp.where(g_mask, th, 0.5 * th + 0.5)
        i_g = act[:, 0 * H:1 * H]
        f_g = act[:, 1 * H:2 * H]
        g_g = act[:, 2 * H:3 * H]
        o_g = act[:, 3 * H:4 * H]
        c = f_g * c + i_g * g_g                                 # f32 state
        h = o_g * jnp.tanh(c)                                   # f32 state

    # fc1 -> dropout(eval=identity) -> relu -> dropout(eval=identity) -> fc2
    hid = jnp.dot(h.astype(jnp.bfloat16), w1p,
                  preferred_element_type=jnp.float32) + b1      # (B, W)
    hid = jnp.maximum(hid, 0.0)
    out_ref[...] = (jnp.dot(hid.astype(jnp.bfloat16), w2p,
                            preferred_element_type=jnp.float32) + b2)


def make_params(key, num_embeddings, embedding_dim, hidden_size, num_classes,
                pad_idx=None):
    """Random params laid out kernel-ready (fused, transposed, padded, bf16)."""
    ks = jax.random.split(key, 8)
    scale = 0.1
    H = hidden_size
    V = num_embeddings
    E = embedding_dim
    W = 4 * H
    assert W % 128 == 0, "slab lane width (4*hidden) must be a multiple of 128"
    assert num_classes <= W

    emb = scale * jax.random.normal(ks[0], (V, E), jnp.float32)
    if pad_idx is not None:
        emb = emb.at[pad_idx].set(0.0)
    # PyTorch LSTM weights: weight_ih (4H, E), weight_hh (4H, H); gates i,f,g,o.
    w_ih = scale * jax.random.normal(ks[1], (W, E), jnp.float32)
    w_hh = scale * jax.random.normal(ks[2], (W, H), jnp.float32)
    b_ih = scale * jax.random.normal(ks[3], (W,), jnp.float32)
    b_hh = scale * jax.random.normal(ks[4], (W,), jnp.float32)
    w1 = scale * jax.random.normal(ks[5], (H, H), jnp.float32)
    b1 = scale * jax.random.normal(ks[6], (H,), jnp.float32)
    w2 = scale * jax.random.normal(ks[7], (num_classes, H), jnp.float32)
    b2 = jnp.zeros((num_classes,), jnp.float32)

    # Fuse embedding with the input projection and fold the summed LSTM bias
    # (exact: every one-hot row sums to 1).
    emb_proj_b = emb @ w_ih.T + (b_ih + b_hh)[None, :]          # (V, W) f32

    Vp = _round_up(V, 16)                                        # bf16-tile aligned
    rows = Vp + H + H + W
    slab = jnp.zeros((rows, W), jnp.float32)
    slab = slab.at[0:V, :].set(emb_proj_b)                       # gather table
    slab = slab.at[Vp:Vp + H, :].set(w_hh.T)                     # recurrence
    slab = slab.at[Vp + H:Vp + 2 * H, 0:H].set(w1.T)             # fc1 (lane-pad)
    slab = slab.at[Vp + 2 * H:Vp + 2 * H + H, 0:num_classes].set(w2.T)  # fc2
    slab = slab.astype(jnp.bfloat16)                             # MXU feed dtype

    biases = jnp.zeros((2, W), jnp.float32)
    biases = biases.at[0, 0:H].set(b1)
    biases = biases.at[1, 0:num_classes].set(b2)

    return dict(slab=slab, biases=biases, hidden=H, vocab=V, vocab_pad=Vp,
                num_classes=num_classes)


def model_forward(x_tokens, params):
    S, batch = x_tokens.shape
    H = params["hidden"]
    W = 4 * H
    Vp = params["vocab_pad"]
    num_classes = params["num_classes"]

    # Pad batch up to the 8-row sublane height (padded rows use token 0 and
    # are sliced off the output).
    B_pad = max(8, _round_up(batch, 8))
    x_pad = jnp.zeros((S, B_pad), jnp.int32).at[:, :batch].set(
        x_tokens.astype(jnp.int32))
    ids_flat = x_pad.reshape(S * B_pad, 1)      # t-major, b-minor

    SB = S * B_pad
    slab_rows = params["slab"].shape[0]
    flops = (2 * SB * Vp * W                    # fused gather + input proj
             + S * 2 * B_pad * H * W            # recurrence h @ Whh
             + 2 * B_pad * H * W                # fc1 (lane-padded)
             + 2 * B_pad * W * W)               # fc2 (row/lane-padded)
    transcendentals = S * (B_pad * W + B_pad * H)   # one tanh(gates) + tanh(c)
    bytes_accessed = (4 * SB                    # ids
                      + 2 * slab_rows * W       # bf16 weight slab
                      + 4 * 2 * W               # f32 bias slab
                      + 4 * B_pad * W)          # output

    vmem = pl.BlockSpec(memory_space=pltpu.MemorySpace.VMEM)
    kernel = functools.partial(lstm_mlp_kernel, seq_len=S, batch=B_pad,
                               hidden=H, vocab_pad=Vp)
    out_pad = pl.pallas_call(
        kernel,
        out_shape=jax.ShapeDtypeStruct((B_pad, W), jnp.float32),
        in_specs=[vmem, vmem, vmem],
        out_specs=vmem,
        cost_estimate=pl.CostEstimate(flops=flops,
                                      transcendentals=transcendentals,
                                      bytes_accessed=bytes_accessed),
    )(ids_flat, params["slab"], params["biases"])

    return out_pad[:batch, :num_classes]


if __name__ == "__main__":
    # Small shapes consistent with the module's forward.
    seq_len = 8
    batch = 4
    num_embeddings = 50
    embedding_dim = 32
    hidden_size = 32
    num_classes = 3

    key = jax.random.PRNGKey(0)
    k_tok, k_par = jax.random.split(key)

    params = make_params(k_par, num_embeddings, embedding_dim, hidden_size,
                         num_classes, pad_idx=0)
    # x: (seq_len, batch) int32 token indices (seq-first, like torch LSTM).
    x = jax.random.randint(k_tok, (seq_len, batch), 0, num_embeddings, jnp.int32)

    logits = model_forward(x, params)
    jax.block_until_ready(logits)
    assert logits.shape == (batch, num_classes)
    assert logits.dtype == jnp.float32
    print("KERNEL_OK")
</pallas_src>

<mosaic_0001>
module attributes {stable_mosaic.version = 11 : i64} {
  func.func @lstm_mlp_kernel(%arg0: memref<64x1xi32, #tpu.memory_space<vmem>>, %arg1: memref<256x128xbf16, #tpu.memory_space<vmem>>, %arg2: memref<2x128xf32, #tpu.memory_space<vmem>>, %arg3: memref<8x128xf32, #tpu.memory_space<vmem>>) attributes {dimension_semantics = [], scalar_prefetch = 0 : i64, scratch_operands = 0 : i64, tpu.core_type = #tpu.core_type<tc>} {
    %c0 = arith.constant 0 : index
    %c0_0 = arith.constant 0 : index
    %0 = vector.load %arg0[%c0, %c0_0] : memref<64x1xi32, #tpu.memory_space<vmem>>, vector<64x1xi32>
    %1 = tpu.iota {dimensions = array<i32: 1>} : vector<64x64xi32>
    %2 = vector.broadcast %0 : vector<64x1xi32> to vector<64x64xi32>
    %3 = arith.cmpi eq, %2, %1 : vector<64x64xi32>
    %4 = arith.extui %3 : vector<64x64xi1> to vector<64x64xi32>
    %5 = arith.sitofp %4 : vector<64x64xi32> to vector<64x64xf32>
    %6 = arith.truncf %5 : vector<64x64xf32> to vector<64x64xbf16>
    %c0_1 = arith.constant 0 : index
    %c0_2 = arith.constant 0 : index
    %7 = vector.load %arg1[%c0_1, %c0_2] : memref<256x128xbf16, #tpu.memory_space<vmem>>, vector<64x128xbf16>
    %cst = arith.constant dense<0.000000e+00> : vector<64x128xf32>
    %8 = tpu.matmul %6, %7, %cst {dimension_numbers = #tpu.dot_dimension_numbers<[1], [0], [0], [1], [0, 0, 1, 1], [], []>} : vector<64x64xbf16>, vector<64x128xbf16>, vector<64x128xf32> -> vector<64x128xf32>
    %c64 = arith.constant 64 : index
    %c0_3 = arith.constant 0 : index
    %9 = vector.load %arg1[%c64, %c0_3] : memref<256x128xbf16, #tpu.memory_space<vmem>>, vector<32x128xbf16>
    %c96 = arith.constant 96 : index
    %c0_4 = arith.constant 0 : index
    %10 = vector.load %arg1[%c96, %c0_4] : memref<256x128xbf16, #tpu.memory_space<vmem>>, vector<32x128xbf16>
    %c128 = arith.constant 128 : index
    %c0_5 = arith.constant 0 : index
    %11 = vector.load %arg1[%c128, %c0_5] : memref<256x128xbf16, #tpu.memory_space<vmem>>, vector<128x128xbf16>
    %c0_6 = arith.constant 0 : index
    %c0_7 = arith.constant 0 : index
    %12 = vector.load %arg2[%c0_6, %c0_7] : memref<2x128xf32, #tpu.memory_space<vmem>>, vector<1x128xf32>
    %c1 = arith.constant 1 : index
    %c0_8 = arith.constant 0 : index
    %13 = vector.load %arg2[%c1, %c0_8] : memref<2x128xf32, #tpu.memory_space<vmem>>, vector<1x128xf32>
    %14 = tpu.iota {dimensions = array<i32: 1>} : vector<8x128xi32>
    %c64_i32 = arith.constant 64 : i32
    %15 = vector.broadcast %c64_i32 : i32 to vector<8x128xi32>
    %16 = arith.cmpi sge, %14, %15 : vector<8x128xi32>
    %c96_i32 = arith.constant 96 : i32
    %17 = vector.broadcast %c96_i32 : i32 to vector<8x128xi32>
    %18 = arith.cmpi slt, %14, %17 : vector<8x128xi32>
    %19 = arith.andi %16, %18 : vector<8x128xi1>
    %cst_9 = arith.constant 0.000000e+00 : f32
    %20 = vector.broadcast %cst_9 : f32 to vector<8x32xf32>
    %cst_10 = arith.constant 0.000000e+00 : f32
    %21 = vector.broadcast %cst_10 : f32 to vector<8x32xf32>
    %22 = vector.extract_strided_slice %8 {offsets = [0, 0], sizes = [8, 128], strides = [1, 1]} : vector<64x128xf32> to vector<8x128xf32>
    %23 = arith.truncf %20 : vector<8x32xf32> to vector<8x32xbf16>
    %cst_11 = arith.constant dense<0.000000e+00> : vector<8x128xf32>
    %24 = tpu.matmul %23, %9, %cst_11 {dimension_numbers = #tpu.dot_dimension_numbers<[1], [0], [0], [1], [0, 0, 1, 1], [], []>} : vector<8x32xbf16>, vector<32x128xbf16>, vector<8x128xf32> -> vector<8x128xf32>
    %25 = arith.addf %22, %24 : vector<8x128xf32>
    %cst_12 = arith.constant 5.000000e-01 : f32
    %26 = vector.broadcast %cst_12 : f32 to vector<8x128xf32>
    %27 = arith.mulf %26, %25 : vector<8x128xf32>
    %28 = arith.select %19, %25, %27 : vector<8x128xi1>, vector<8x128xf32>
    %29 = math.tanh %28 : vector<8x128xf32>
    %cst_13 = arith.constant 5.000000e-01 : f32
    %30 = vector.broadcast %cst_13 : f32 to vector<8x128xf32>
    %31 = arith.mulf %30, %29 : vector<8x128xf32>
    %cst_14 = arith.constant 5.000000e-01 : f32
    %32 = vector.broadcast %cst_14 : f32 to vector<8x128xf32>
    %33 = arith.addf %31, %32 : vector<8x128xf32>
    %34 = arith.select %19, %29, %33 : vector<8x128xi1>, vector<8x128xf32>
    %35 = vector.extract_strided_slice %34 {offsets = [0, 0], sizes = [8, 32], strides = [1, 1]} : vector<8x128xf32> to vector<8x32xf32>
    %36 = vector.extract_strided_slice %34 {offsets = [0, 32], sizes = [8, 32], strides = [1, 1]} : vector<8x128xf32> to vector<8x32xf32>
    %37 = vector.extract_strided_slice %34 {offsets = [0, 64], sizes = [8, 32], strides = [1, 1]} : vector<8x128xf32> to vector<8x32xf32>
    %38 = vector.extract_strided_slice %34 {offsets = [0, 96], sizes = [8, 32], strides = [1, 1]} : vector<8x128xf32> to vector<8x32xf32>
    %39 = arith.mulf %36, %21 : vector<8x32xf32>
    %40 = arith.mulf %35, %37 : vector<8x32xf32>
    %41 = arith.addf %39, %40 : vector<8x32xf32>
    %42 = math.tanh %41 : vector<8x32xf32>
    %43 = arith.mulf %38, %42 : vector<8x32xf32>
    %44 = vector.extract_strided_slice %8 {offsets = [8, 0], sizes = [8, 128], strides = [1, 1]} : vector<64x128xf32> to vector<8x128xf32>
    %45 = arith.truncf %43 : vector<8x32xf32> to vector<8x32xbf16>
    %cst_15 = arith.constant dense<0.000000e+00> : vector<8x128xf32>
    %46 = tpu.matmul %45, %9, %cst_15 {dimension_numbers = #tpu.dot_dimension_numbers<[1], [0], [0], [1], [0, 0, 1, 1], [], []>} : vector<8x32xbf16>, vector<32x128xbf16>, vector<8x128xf32> -> vector<8x128xf32>
    %47 = arith.addf %44, %46 : vector<8x128xf32>
    %cst_16 = arith.constant 5.000000e-01 : f32
    %48 = vector.broadcast %cst_16 : f32 to vector<8x128xf32>
    %49 = arith.mulf %48, %47 : vector<8x128xf32>
    %50 = arith.select %19, %47, %49 : vector<8x128xi1>, vector<8x128xf32>
    %51 = math.tanh %50 : vector<8x128xf32>
    %cst_17 = arith.constant 5.000000e-01 : f32
    %52 = vector.broadcast %cst_17 : f32 to vector<8x128xf32>
    %53 = arith.mulf %52, %51 : vector<8x128xf32>
    %cst_18 = arith.constant 5.000000e-01 : f32
    %54 = vector.broadcast %cst_18 : f32 to vector<8x128xf32>
    %55 = arith.addf %53, %54 : vector<8x128xf32>
    %56 = arith.select %19, %51, %55 : vector<8x128xi1>, vector<8x128xf32>
    %57 = vector.extract_strided_slice %56 {offsets = [0, 0], sizes = [8, 32], strides = [1, 1]} : vector<8x128xf32> to vector<8x32xf32>
    %58 = vector.extract_strided_slice %56 {offsets = [0, 32], sizes = [8, 32], strides = [1, 1]} : vector<8x128xf32> to vector<8x32xf32>
    %59 = vector.extract_strided_slice %56 {offsets = [0, 64], sizes = [8, 32], strides = [1, 1]} : vector<8x128xf32> to vector<8x32xf32>
    %60 = vector.extract_strided_slice %56 {offsets = [0, 96], sizes = [8, 32], strides = [1, 1]} : vector<8x128xf32> to vector<8x32xf32>
    %61 = arith.mulf %58, %41 : vector<8x32xf32>
    %62 = arith.mulf %57, %59 : vector<8x32xf32>
    %63 = arith.addf %61, %62 : vector<8x32xf32>
    %64 = math.tanh %63 : vector<8x32xf32>
    %65 = arith.mulf %60, %64 : vector<8x32xf32>
    %66 = vector.extract_strided_slice %8 {offsets = [16, 0], sizes = [8, 128], strides = [1, 1]} : vector<64x128xf32> to vector<8x128xf32>
    %67 = arith.truncf %65 : vector<8x32xf32> to vector<8x32xbf16>
    %cst_19 = arith.constant dense<0.000000e+00> : vector<8x128xf32>
    %68 = tpu.matmul %67, %9, %cst_19 {dimension_numbers = #tpu.dot_dimension_numbers<[1], [0], [0], [1], [0, 0, 1, 1], [], []>} : vector<8x32xbf16>, vector<32x128xbf16>, vector<8x128xf32> -> vector<8x128xf32>
    %69 = arith.addf %66, %68 : vector<8x128xf32>
    %cst_20 = arith.constant 5.000000e-01 : f32
    %70 = vector.broadcast %cst_20 : f32 to vector<8x128xf32>
    %71 = arith.mulf %70, %69 : vector<8x128xf32>
    %72 = arith.select %19, %69, %71 : vector<8x128xi1>, vector<8x128xf32>
    %73 = math.tanh %72 : vector<8x128xf32>
    %cst_21 = arith.constant 5.000000e-01 : f32
    %74 = vector.broadcast %cst_21 : f32 to vector<8x128xf32>
    %75 = arith.mulf %74, %73 : vector<8x128xf32>
    %cst_22 = arith.constant 5.000000e-01 : f32
    %76 = vector.broadcast %cst_22 : f32 to vector<8x128xf32>
    %77 = arith.addf %75, %76 : vector<8x128xf32>
    %78 = arith.select %19, %73, %77 : vector<8x128xi1>, vector<8x128xf32>
    %79 = vector.extract_strided_slice %78 {offsets = [0, 0], sizes = [8, 32], strides = [1, 1]} : vector<8x128xf32> to vector<8x32xf32>
    %80 = vector.extract_strided_slice %78 {offsets = [0, 32], sizes = [8, 32], strides = [1, 1]} : vector<8x128xf32> to vector<8x32xf32>
    %81 = vector.extract_strided_slice %78 {offsets = [0, 64], sizes = [8, 32], strides = [1, 1]} : vector<8x128xf32> to vector<8x32xf32>
    %82 = vector.extract_strided_slice %78 {offsets = [0, 96], sizes = [8, 32], strides = [1, 1]} : vector<8x128xf32> to vector<8x32xf32>
    %83 = arith.mulf %80, %63 : vector<8x32xf32>
    %84 = arith.mulf %79, %81 : vector<8x32xf32>
    %85 = arith.addf %83, %84 : vector<8x32xf32>
    %86 = math.tanh %85 : vector<8x32xf32>
    %87 = arith.mulf %82, %86 : vector<8x32xf32>
    %88 = vector.extract_strided_slice %8 {offsets = [24, 0], sizes = [8, 128], strides = [1, 1]} : vector<64x128xf32> to vector<8x128xf32>
    %89 = arith.truncf %87 : vector<8x32xf32> to vector<8x32xbf16>
    %cst_23 = arith.constant dense<0.000000e+00> : vector<8x128xf32>
    %90 = tpu.matmul %89, %9, %cst_23 {dimension_numbers = #tpu.dot_dimension_numbers<[1], [0], [0], [1], [0, 0, 1, 1], [], []>} : vector<8x32xbf16>, vector<32x128xbf16>, vector<8x128xf32> -> vector<8x128xf32>
    %91 = arith.addf %88, %90 : vector<8x128xf32>
    %cst_24 = arith.constant 5.000000e-01 : f32
    %92 = vector.broadcast %cst_24 : f32 to vector<8x128xf32>
    %93 = arith.mulf %92, %91 : vector<8x128xf32>
    %94 = arith.select %19, %91, %93 : vector<8x128xi1>, vector<8x128xf32>
    %95 = math.tanh %94 : vector<8x128xf32>
    %cst_25 = arith.constant 5.000000e-01 : f32
    %96 = vector.broadcast %cst_25 : f32 to vector<8x128xf32>
    %97 = arith.mulf %96, %95 : vector<8x128xf32>
    %cst_26 = arith.constant 5.000000e-01 : f32
    %98 = vector.broadcast %cst_26 : f32 to vector<8x128xf32>
    %99 = arith.addf %97, %98 : vector<8x128xf32>
    %100 = arith.select %19, %95, %99 : vector<8x128xi1>, vector<8x128xf32>
    %101 = vector.extract_strided_slice %100 {offsets = [0, 0], sizes = [8, 32], strides = [1, 1]} : vector<8x128xf32> to vector<8x32xf32>
    %102 = vector.extract_strided_slice %100 {offsets = [0, 32], sizes = [8, 32], strides = [1, 1]} : vector<8x128xf32> to vector<8x32xf32>
    %103 = vector.extract_strided_slice %100 {offsets = [0, 64], sizes = [8, 32], strides = [1, 1]} : vector<8x128xf32> to vector<8x32xf32>
    %104 = vector.extract_strided_slice %100 {offsets = [0, 96], sizes = [8, 32], strides = [1, 1]} : vector<8x128xf32> to vector<8x32xf32>
    %105 = arith.mulf %102, %85 : vector<8x32xf32>
    %106 = arith.mulf %101, %103 : vector<8x32xf32>
    %107 = arith.addf %105, %106 : vector<8x32xf32>
    %108 = math.tanh %107 : vector<8x32xf32>
    %109 = arith.mulf %104, %108 : vector<8x32xf32>
    %110 = vector.extract_strided_slice %8 {offsets = [32, 0], sizes = [8, 128], strides = [1, 1]} : vector<64x128xf32> to vector<8x128xf32>
    %111 = arith.truncf %109 : vector<8x32xf32> to vector<8x32xbf16>
    %cst_27 = arith.constant dense<0.000000e+00> : vector<8x128xf32>
    %112 = tpu.matmul %111, %9, %cst_27 {dimension_numbers = #tpu.dot_dimension_numbers<[1], [0], [0], [1], [0, 0, 1, 1], [], []>} : vector<8x32xbf16>, vector<32x128xbf16>, vector<8x128xf32> -> vector<8x128xf32>
    %113 = arith.addf %110, %112 : vector<8x128xf32>
    %cst_28 = arith.constant 5.000000e-01 : f32
    %114 = vector.broadcast %cst_28 : f32 to vector<8x128xf32>
    %115 = arith.mulf %114, %113 : vector<8x128xf32>
    %116 = arith.select %19, %113, %115 : vector<8x128xi1>, vector<8x128xf32>
    %117 = math.tanh %116 : vector<8x128xf32>
    %cst_29 = arith.constant 5.000000e-01 : f32
    %118 = vector.broadcast %cst_29 : f32 to vector<8x128xf32>
    %119 = arith.mulf %118, %117 : vector<8x128xf32>
    %cst_30 = arith.constant 5.000000e-01 : f32
    %120 = vector.broadcast %cst_30 : f32 to vector<8x128xf32>
    %121 = arith.addf %119, %120 : vector<8x128xf32>
    %122 = arith.select %19, %117, %121 : vector<8x128xi1>, vector<8x128xf32>
    %123 = vector.extract_strided_slice %122 {offsets = [0, 0], sizes = [8, 32], strides = [1, 1]} : vector<8x128xf32> to vector<8x32xf32>
    %124 = vector.extract_strided_slice %122 {offsets = [0, 32], sizes = [8, 32], strides = [1, 1]} : vector<8x128xf32> to vector<8x32xf32>
    %125 = vector.extract_strided_slice %122 {offsets = [0, 64], sizes = [8, 32], strides = [1, 1]} : vector<8x128xf32> to vector<8x32xf32>
    %126 = vector.extract_strided_slice %122 {offsets = [0, 96], sizes = [8, 32], strides = [1, 1]} : vector<8x128xf32> to vector<8x32xf32>
    %127 = arith.mulf %124, %107 : vector<8x32xf32>
    %128 = arith.mulf %123, %125 : vector<8x32xf32>
    %129 = arith.addf %127, %128 : vector<8x32xf32>
    %130 = math.tanh %129 : vector<8x32xf32>
    %131 = arith.mulf %126, %130 : vector<8x32xf32>
    %132 = vector.extract_strided_slice %8 {offsets = [40, 0], sizes = [8, 128], strides = [1, 1]} : vector<64x128xf32> to vector<8x128xf32>
    %133 = arith.truncf %131 : vector<8x32xf32> to vector<8x32xbf16>
    %cst_31 = arith.constant dense<0.000000e+00> : vector<8x128xf32>
    %134 = tpu.matmul %133, %9, %cst_31 {dimension_numbers = #tpu.dot_dimension_numbers<[1], [0], [0], [1], [0, 0, 1, 1], [], []>} : vector<8x32xbf16>, vector<32x128xbf16>, vector<8x128xf32> -> vector<8x128xf32>
    %135 = arith.addf %132, %134 : vector<8x128xf32>
    %cst_32 = arith.constant 5.000000e-01 : f32
    %136 = vector.broadcast %cst_32 : f32 to vector<8x128xf32>
    %137 = arith.mulf %136, %135 : vector<8x128xf32>
    %138 = arith.select %19, %135, %137 : vector<8x128xi1>, vector<8x128xf32>
    %139 = math.tanh %138 : vector<8x128xf32>
    %cst_33 = arith.constant 5.000000e-01 : f32
    %140 = vector.broadcast %cst_33 : f32 to vector<8x128xf32>
    %141 = arith.mulf %140, %139 : vector<8x128xf32>
    %cst_34 = arith.constant 5.000000e-01 : f32
    %142 = vector.broadcast %cst_34 : f32 to vector<8x128xf32>
    %143 = arith.addf %141, %142 : vector<8x128xf32>
    %144 = arith.select %19, %139, %143 : vector<8x128xi1>, vector<8x128xf32>
    %145 = vector.extract_strided_slice %144 {offsets = [0, 0], sizes = [8, 32], strides = [1, 1]} : vector<8x128xf32> to vector<8x32xf32>
    %146 = vector.extract_strided_slice %144 {offsets = [0, 32], sizes = [8, 32], strides = [1, 1]} : vector<8x128xf32> to vector<8x32xf32>
    %147 = vector.extract_strided_slice %144 {offsets = [0, 64], sizes = [8, 32], strides = [1, 1]} : vector<8x128xf32> to vector<8x32xf32>
    %148 = vector.extract_strided_slice %144 {offsets = [0, 96], sizes = [8, 32], strides = [1, 1]} : vector<8x128xf32> to vector<8x32xf32>
    %149 = arith.mulf %146, %129 : vector<8x32xf32>
    %150 = arith.mulf %145, %147 : vector<8x32xf32>
    %151 = arith.addf %149, %150 : vector<8x32xf32>
    %152 = math.tanh %151 : vector<8x32xf32>
    %153 = arith.mulf %148, %152 : vector<8x32xf32>
    %154 = vector.extract_strided_slice %8 {offsets = [48, 0], sizes = [8, 128], strides = [1, 1]} : vector<64x128xf32> to vector<8x128xf32>
    %155 = arith.truncf %153 : vector<8x32xf32> to vector<8x32xbf16>
    %cst_35 = arith.constant dense<0.000000e+00> : vector<8x128xf32>
    %156 = tpu.matmul %155, %9, %cst_35 {dimension_numbers = #tpu.dot_dimension_numbers<[1], [0], [0], [1], [0, 0, 1, 1], [], []>} : vector<8x32xbf16>, vector<32x128xbf16>, vector<8x128xf32> -> vector<8x128xf32>
    %157 = arith.addf %154, %156 : vector<8x128xf32>
    %cst_36 = arith.constant 5.000000e-01 : f32
    %158 = vector.broadcast %cst_36 : f32 to vector<8x128xf32>
    %159 = arith.mulf %158, %157 : vector<8x128xf32>
    %160 = arith.select %19, %157, %159 : vector<8x128xi1>, vector<8x128xf32>
    %161 = math.tanh %160 : vector<8x128xf32>
    %cst_37 = arith.constant 5.000000e-01 : f32
    %162 = vector.broadcast %cst_37 : f32 to vector<8x128xf32>
    %163 = arith.mulf %162, %161 : vector<8x128xf32>
    %cst_38 = arith.constant 5.000000e-01 : f32
    %164 = vector.broadcast %cst_38 : f32 to vector<8x128xf32>
    %165 = arith.addf %163, %164 : vector<8x128xf32>
    %166 = arith.select %19, %161, %165 : vector<8x128xi1>, vector<8x128xf32>
    %167 = vector.extract_strided_slice %166 {offsets = [0, 0], sizes = [8, 32], strides = [1, 1]} : vector<8x128xf32> to vector<8x32xf32>
    %168 = vector.extract_strided_slice %166 {offsets = [0, 32], sizes = [8, 32], strides = [1, 1]} : vector<8x128xf32> to vector<8x32xf32>
    %169 = vector.extract_strided_slice %166 {offsets = [0, 64], sizes = [8, 32], strides = [1, 1]} : vector<8x128xf32> to vector<8x32xf32>
    %170 = vector.extract_strided_slice %166 {offsets = [0, 96], sizes = [8, 32], strides = [1, 1]} : vector<8x128xf32> to vector<8x32xf32>
    %171 = arith.mulf %168, %151 : vector<8x32xf32>
    %172 = arith.mulf %167, %169 : vector<8x32xf32>
    %173 = arith.addf %171, %172 : vector<8x32xf32>
    %174 = math.tanh %173 : vector<8x32xf32>
    %175 = arith.mulf %170, %174 : vector<8x32xf32>
    %176 = vector.extract_strided_slice %8 {offsets = [56, 0], sizes = [8, 128], strides = [1, 1]} : vector<64x128xf32> to vector<8x128xf32>
    %177 = arith.truncf %175 : vector<8x32xf32> to vector<8x32xbf16>
    %cst_39 = arith.constant dense<0.000000e+00> : vector<8x128xf32>
    %178 = tpu.matmul %177, %9, %cst_39 {dimension_numbers = #tpu.dot_dimension_numbers<[1], [0], [0], [1], [0, 0, 1, 1], [], []>} : vector<8x32xbf16>, vector<32x128xbf16>, vector<8x128xf32> -> vector<8x128xf32>
    %179 = arith.addf %176, %178 : vector<8x128xf32>
    %cst_40 = arith.constant 5.000000e-01 : f32
    %180 = vector.broadcast %cst_40 : f32 to vector<8x128xf32>
    %181 = arith.mulf %180, %179 : vector<8x128xf32>
    %182 = arith.select %19, %179, %181 : vector<8x128xi1>, vector<8x128xf32>
    %183 = math.tanh %182 : vector<8x128xf32>
    %cst_41 = arith.constant 5.000000e-01 : f32
    %184 = vector.broadcast %cst_41 : f32 to vector<8x128xf32>
    %185 = arith.mulf %184, %183 : vector<8x128xf32>
    %cst_42 = arith.constant 5.000000e-01 : f32
    %186 = vector.broadcast %cst_42 : f32 to vector<8x128xf32>
    %187 = arith.addf %185, %186 : vector<8x128xf32>
    %188 = arith.select %19, %183, %187 : vector<8x128xi1>, vector<8x128xf32>
    %189 = vector.extract_strided_slice %188 {offsets = [0, 0], sizes = [8, 32], strides = [1, 1]} : vector<8x128xf32> to vector<8x32xf32>
    %190 = vector.extract_strided_slice %188 {offsets = [0, 32], sizes = [8, 32], strides = [1, 1]} : vector<8x128xf32> to vector<8x32xf32>
    %191 = vector.extract_strided_slice %188 {offsets = [0, 64], sizes = [8, 32], strides = [1, 1]} : vector<8x128xf32> to vector<8x32xf32>
    %192 = vector.extract_strided_slice %188 {offsets = [0, 96], sizes = [8, 32], strides = [1, 1]} : vector<8x128xf32> to vector<8x32xf32>
    %193 = arith.mulf %190, %173 : vector<8x32xf32>
    %194 = arith.mulf %189, %191 : vector<8x32xf32>
    %195 = arith.addf %193, %194 : vector<8x32xf32>
    %196 = math.tanh %195 : vector<8x32xf32>
    %197 = arith.mulf %192, %196 : vector<8x32xf32>
    %198 = arith.truncf %197 : vector<8x32xf32> to vector<8x32xbf16>
    %cst_43 = arith.constant dense<0.000000e+00> : vector<8x128xf32>
    %199 = tpu.matmul %198, %10, %cst_43 {dimension_numbers = #tpu.dot_dimension_numbers<[1], [0], [0], [1], [0, 0, 1, 1], [], []>} : vector<8x32xbf16>, vector<32x128xbf16>, vector<8x128xf32> -> vector<8x128xf32>
    %200 = vector.broadcast %12 : vector<1x128xf32> to vector<8x128xf32>
    %201 = arith.addf %199, %200 : vector<8x128xf32>
    %cst_44 = arith.constant 0.000000e+00 : f32
    %202 = vector.broadcast %cst_44 : f32 to vector<8x128xf32>
    %203 = arith.maximumf %201, %202 : vector<8x128xf32>
    %204 = arith.truncf %203 : vector<8x128xf32> to vector<8x128xbf16>
    %cst_45 = arith.constant dense<0.000000e+00> : vector<8x128xf32>
    %205 = tpu.matmul %204, %11, %cst_45 {dimension_numbers = #tpu.dot_dimension_numbers<[1], [0], [0], [1], [0, 0, 1, 1], [], []>} : vector<8x128xbf16>, vector<128x128xbf16>, vector<8x128xf32> -> vector<8x128xf32>
    %206 = vector.broadcast %13 : vector<1x128xf32> to vector<8x128xf32>
    %207 = arith.addf %205, %206 : vector<8x128xf32>
    %c0_46 = arith.constant 0 : index
    %c0_47 = arith.constant 0 : index
    %208 = vector.load %arg3[%c0_46, %c0_47] : memref<8x128xf32, #tpu.memory_space<vmem>>, vector<8x128xf32>
    tpu.vector_store %arg3[%c0_46, %c0_47], %207 {strides = array<i32>} : memref<8x128xf32, #tpu.memory_space<vmem>>, vector<8x128xf32>,
    return
  }
}

</mosaic_0001>

<llo_original>
// kernel: tpu_custom_call.1
$region0: #{tpu_custom_call.1}
  #allocation0 [shape = 'u32[]', space=smem, size = 0x4, offset = 0x4, fixed_abs, tag = 'smem constant byte address 0x4 - core index']
  #allocation1 [shape = 'u32[144,128]{1,0:T(1,128)}', space=vmem, size = 0x12000, scoped, tag = 'internal scratch']
  %s0 = inlined_call_operand.vmem [shape: s32[64,1], index: 0, kind: input, shape index: {}]
  %s1 = inlined_call_operand.hbm [shape: bf16[256,128], index: 1, kind: input, shape index: {}]
  %s2 = inlined_call_operand.vmem [shape: f32[2,128], index: 2, kind: input, shape index: {}]
  %s3 = inlined_call_operand.hbm [shape: f32[8,128], index: 3, kind: output, shape index: {}]
  %s4 = sld [smem:[#allocation0]]
  $region26: #{tpu_custom_call.1} parent=0
    _
  %s6 = ssub.s32 1, %s4
  %s7 = scalar_select 0, %s6, %s4
  $region1: #{tpu_custom_call.1} parent=0
    #allocation2 [shape = 'u8[65536]{0}', space=vmem, size = 0x10000, scoped, tag = 'input window, operand 1, single buffered']
    #allocation3 [shape = 's32[1]{0}', space=sflag, size = 0x4, scoped, tag = 'scoped memory for tpu_custom_call.1']
    #allocation4 [shape = 's32[1]{0}', space=sflag, size = 0x4, scoped, tag = 'scoped memory for tpu_custom_call.1']
    #allocation5 [shape = 'u8[4096]{0}', space=vmem, size = 0x1000, scoped, tag = 'output window, operand 0, single buffered']
    %8 = vsyncpa [#allocation3], 0
    %9 = vsyncpa [#allocation4], 0
    // Predicated region
    $region2: #{tpu_custom_call.1} parent=1 // pred_check
      _
    $region3: #{tpu_custom_call.1} parent=1 // pred_check_branch
      %11 = sbr.rel (0) target = $region5
    $region4: #{tpu_custom_call.1} parent=1 // pred_region
      _
    $region5: #{tpu_custom_call.1} parent=1 // pred_fallthru
      _
    // Predicated region
    $region6: #{tpu_custom_call.1} parent=1 // pred_check
      _
    $region7: #{tpu_custom_call.1} parent=1 // pred_check_branch
      %13 = sbr.rel (0) target = $region9
    $region8: #{tpu_custom_call.1} parent=1 // pred_region
      %s15 = ssub.s32 2048, 2048
      %16 = vsyncadd [#allocation3], %s15
      %s17 = sshll.u32 [#allocation2], 4
      %s18 = int_to_ptr.vmem [resolvable:$true] %s17
      %23 = dma.hbm_to_vmem [thread:$0]  %s1, 2048, %s18, [#allocation3], 64, 64, 4
    $region9: #{tpu_custom_call.1} parent=1 // pred_fallthru
      _
    // Predicated region
    $region10: #{tpu_custom_call.1} parent=1 // pred_check
      _
    $region11: #{tpu_custom_call.1} parent=1 // pred_check_branch
      %25 = sbr.rel (0) target = $region13
    $region12: #{tpu_custom_call.1} parent=1 // pred_region
      _
    $region13: #{tpu_custom_call.1} parent=1 // pred_fallthru
      _
    // Predicated region
    $region14: #{tpu_custom_call.1} parent=1 // pred_check
      _
    $region15: #{tpu_custom_call.1} parent=1 // pred_check_branch
      %27 = sbr.rel (0) target = $region17
    $region16: #{tpu_custom_call.1} parent=1 // pred_region
      %28 = dma.done [#allocation3], 2048
    $region17: #{tpu_custom_call.1} parent=1 // pred_fallthru
      _
    %v30 = vld [vmem:[%s0] sm:$0xff]
    %v31 = vld [vmem:[%s0 + $0x8] sm:$0xff]
    %v32 = vld [vmem:[%s0 + $0x10] sm:$0xff]
    %v33 = vld [vmem:[%s0 + $0x18] sm:$0xff]
    %v34 = vld [vmem:[%s0 + $0x20] sm:$0xff]
    %v35 = vld [vmem:[%s0 + $0x28] sm:$0xff]
    %v36 = vld [vmem:[%s0 + $0x30] sm:$0xff]
    %v37 = vld [vmem:[%s0 + $0x38] sm:$0xff]
    %v38 = vlaneseq
    %v39 = vand.u32 %v38, 127
    %40 = vset.pattern.permute.xlu0 0
    %41 = vperm.xlu0 %40, %v30
    %v42 = vpop.permute.xlu0 %41
    %43 = vset.pattern.permute.xlu0 0
    %44 = vperm.xlu0 %43, %v31
    %v45 = vpop.permute.xlu0 %44
    %46 = vset.pattern.permute.xlu0 0
    %47 = vperm.xlu0 %46, %v32
    %v48 = vpop.permute.xlu0 %47
    %49 = vset.pattern.permute.xlu0 0
    %50 = vperm.xlu0 %49, %v33
    %v51 = vpop.permute.xlu0 %50
    %52 = vset.pattern.permute.xlu0 0
    %53 = vperm.xlu0 %52, %v34
    %v54 = vpop.permute.xlu0 %53
    %55 = vset.pattern.permute.xlu0 0
    %56 = vperm.xlu0 %55, %v35
    %v57 = vpop.permute.xlu0 %56
    %58 = vset.pattern.permute.xlu0 0
    %59 = vperm.xlu0 %58, %v36
    %v60 = vpop.permute.xlu0 %59
    %61 = vset.pattern.permute.xlu0 0
    %62 = vperm.xlu0 %61, %v37
    %v63 = vpop.permute.xlu0 %62
    %vm64 = vcmp.eq.s32.totalorder %v42, %v39
    %vm65 = vcmp.eq.s32.totalorder %v45, %v39
    %vm66 = vcmp.eq.s32.totalorder %v48, %v39
    %vm67 = vcmp.eq.s32.totalorder %v51, %v39
    %vm68 = vcmp.eq.s32.totalorder %v54, %v39
    %vm69 = vcmp.eq.s32.totalorder %v57, %v39
    %vm70 = vcmp.eq.s32.totalorder %v60, %v39
    %vm71 = vcmp.eq.s32.totalorder %v63, %v39
    %v72 = vsel %vm64, 1, 0
    %v73 = vsel %vm65, 1, 0
    %v74 = vsel %vm66, 1, 0
    %v75 = vsel %vm67, 1, 0
    %v76 = vsel %vm68, 1, 0
    %v77 = vsel %vm69, 1, 0
    %v78 = vsel %vm70, 1, 0
    %v79 = vsel %vm71, 1, 0
    %v80 = vcvt.s32.f32 %v72
    %v81 = vcvt.s32.f32 %v73
    %v82 = vcvt.s32.f32 %v74
    %v83 = vcvt.s32.f32 %v75
    %v84 = vcvt.s32.f32 %v76
    %v85 = vcvt.s32.f32 %v77
    %v86 = vcvt.s32.f32 %v78
    %v87 = vcvt.s32.f32 %v79
    %v88 = vpack.c.bf16 %v81, %v80
    %v89 = vpack.c.bf16 %v83, %v82
    %v90 = vpack.c.bf16 %v85, %v84
    %v91 = vpack.c.bf16 %v87, %v86
    %v92 = vld [vmem:[#allocation2] sm:$0xf]
    %v93 = vld [vmem:[#allocation2 + $0x4] sm:$0xf]
    %v94 = vld [vmem:[#allocation2 + $0x8] sm:$0xf]
    %v95 = vld [vmem:[#allocation2 + $0xc] sm:$0xf]
    %v96 = vld [vmem:[#allocation2 + $0x10] sm:$0xf]
    %v97 = vld [vmem:[#allocation2 + $0x14] sm:$0xf]
    %v98 = vld [vmem:[#allocation2 + $0x18] sm:$0xf]
    %v99 = vld [vmem:[#allocation2 + $0x1c] sm:$0xf]
    %v108 = vunpack.c.l.b16 %v92
    %v109 = vunpack.c.l.b16 %v93
    %v110 = vunpack.c.l.b16 %v94
    %v111 = vunpack.c.l.b16 %v95
    %v112 = vunpack.c.l.b16 %v96
    %v113 = vunpack.c.l.b16 %v97
    %v114 = vunpack.c.l.b16 %v98
    %v115 = vunpack.c.l.b16 %v99
    %v116 = vpack.c.b16 %v109, %v108
    %v117 = vpack.c.b16 %v111, %v110
    %v118 = vpack.c.b16 %v113, %v112
    %v119 = vpack.c.b16 %v115, %v114
    %vm124 = vcmask 523264
    %v126 = vsel %vm124, %v88, 0
    %v129 = vsel %vm124, %v89, 0
    %v132 = vsel %vm124, %v90, 0
    %v135 = vsel %vm124, %v91, 0
    %137 = vmatprep.subr.bf16.mxu0 0
    %138 = vmatpush1.bf16.msra.mxu0 %v116
    %139 = vmatprep.subr.bf16.mxu0 0
    %140 = vmatpush1.bf16.msra.mxu0 %v117
    %141 = vmatprep.subr.bf16.mxu0 0
    %142 = vmatpush1.bf16.msra.mxu0 %v118
    %143 = vmatprep.subr.bf16.mxu0 0
    %144 = vmatpush1.bf16.msra.mxu0 %v119
    %145 = vmatprep.subr.bf16.mxu0 0
    %146 = vmatpush1.bf16.msra.mxu0 0
    %147 = vmatprep.subr.bf16.mxu0 0
    %148 = vmatpush1.bf16.msra.mxu0 0
    %149 = vmatprep.subr.bf16.mxu0 0
    %150 = vmatpush1.bf16.msra.mxu0 0
    %151 = vmatprep.subr.bf16.mxu0 0
    %152 = vmatpush1.bf16.msra.mxu0 0
    %153 = vmatprep.subr.bf16.mxu0 0
    %154 = vmatpush1.bf16.msra.mxu0 0
    %155 = vmatprep.subr.bf16.mxu0 0
    %156 = vmatpush1.bf16.msra.mxu0 0
    %157 = vmatprep.subr.bf16.mxu0 0
    %158 = vmatpush1.bf16.msra.mxu0 0
    %159 = vmatprep.subr.bf16.mxu0 0
    %160 = vmatpush1.bf16.msra.mxu0 0
    %161 = vmatprep.subr.bf16.mxu0 0
    %162 = vmatpush1.bf16.msra.mxu0 0
    %163 = vmatprep.subr.bf16.mxu0 0
    %164 = vmatpush1.bf16.msra.mxu0 0
    %165 = vmatprep.subr.bf16.mxu0 0
    %166 = vmatpush1.bf16.msra.mxu0 0
    %167 = vmatprep.subr.bf16.mxu0 0
    %168 = vmatpush1.bf16.msra.mxu0 0
    %169 = vmatprep.mubr.bf16.mxu0 0
    %170 = vmatmul.mubr.bf16.gmra.mrb[0].mxu0 %v126
    %v171 = vpop.f32.mrb[0].mxu0
    %v172 = vadd.f32 0.0, %v171
    %v173 = vpop.f32.mrb[0].mxu0
    %v174 = vpop.f32.mrb[0].mxu0
    %v175 = vadd.f32 0.0, %v174
    %v176 = vpop.f32.mrb[0].mxu0
    %177 = vmatprep.mubr.bf16.mxu0 0
    %178 = vmatmul.mubr.bf16.gmra.mrb[0].mxu0 %v129
    %v179 = vpop.f32.mrb[0].mxu0
    %v180 = vadd.f32 0.0, %v179
    %v181 = vpop.f32.mrb[0].mxu0
    %v182 = vpop.f32.mrb[0].mxu0
    %v183 = vadd.f32 0.0, %v182
    %v184 = vpop.f32.mrb[0].mxu0
    %185 = vmatprep.mubr.bf16.mxu0 0
    %186 = vmatmul.mubr.bf16.gmra.mrb[0].mxu0 %v132
    %v187 = vpop.f32.mrb[0].mxu0
    %v188 = vadd.f32 0.0, %v187
    %v189 = vpop.f32.mrb[0].mxu0
    %v190 = vpop.f32.mrb[0].mxu0
    %v191 = vadd.f32 0.0, %v190
    %v192 = vpop.f32.mrb[0].mxu0
    %193 = vmatprep.mubr.bf16.mxu0 0
    %194 = vmatmul.mubr.bf16.gmra.mrb[0].mxu0 %v135
    %v195 = vpop.f32.mrb[0].mxu0
    %v196 = vadd.f32 0.0, %v195
    %v197 = vpop.f32.mrb[0].mxu0
    %v198 = vpop.f32.mrb[0].mxu0
    %v199 = vadd.f32 0.0, %v198
    %v200 = vpop.f32.mrb[0].mxu0
    %201 = vdwg.mxu0
    %v202 = vld [vmem:[#allocation2 + $0x20] sm:$0xf]
    %v203 = vld [vmem:[#allocation2 + $0x24] sm:$0xf]
    %v204 = vld [vmem:[#allocation2 + $0x28] sm:$0xf]
    %v205 = vld [vmem:[#allocation2 + $0x2c] sm:$0xf]
    %v206 = vld [vmem:[#allocation2 + $0x30] sm:$0xf]
    %v207 = vld [vmem:[#allocation2 + $0x34] sm:$0xf]
    %v208 = vld [vmem:[#allocation2 + $0x38] sm:$0xf]
    %v209 = vld [vmem:[#allocation2 + $0x3c] sm:$0xf]
    %v210 = vld [vmem:[#allocation2 + $0x40] sm:$0xf]
    %v211 = vld [vmem:[#allocation2 + $0x44] sm:$0xf]
    %v212 = vld [vmem:[#allocation2 + $0x48] sm:$0xf]
    %v213 = vld [vmem:[#allocation2 + $0x4c] sm:$0xf]
    %v214 = vld [vmem:[#allocation2 + $0x50] sm:$0xf]
    %v215 = vld [vmem:[#allocation2 + $0x54] sm:$0xf]
    %v216 = vld [vmem:[#allocation2 + $0x58] sm:$0xf]
    %v217 = vld [vmem:[#allocation2 + $0x5c] sm:$0xf]
    %v218 = vld [vmem:[#allocation2 + $0x60] sm:$0xf]
    %v219 = vld [vmem:[#allocation2 + $0x64] sm:$0xf]
    %v220 = vld [vmem:[#allocation2 + $0x68] sm:$0xf]
    %v221 = vld [vmem:[#allocation2 + $0x6c] sm:$0xf]
    %v222 = vld [vmem:[#allocation2 + $0x70] sm:$0xf]
    %v223 = vld [vmem:[#allocation2 + $0x74] sm:$0xf]
    %v224 = vld [vmem:[#allocation2 + $0x78] sm:$0xf]
    %v225 = vld [vmem:[#allocation2 + $0x7c] sm:$0xf]
    %v226 = vld [vmem:[%s2] sm:$0x1]
    %v227 = vld [vmem:[%s2 + $0x1] sm:$0x1]
    %vm228 = vcmp.ge.s32.totalorder %v39, 64
    %vm229 = vcmp.lt.s32.totalorder %v39, 96
    %vm230 = vmand %vm228, %vm229
    %v235 = vunpack.c.l.b16 %v202
    %v236 = vunpack.c.l.b16 %v203
    %v237 = vunpack.c.l.b16 %v204
    %v238 = vunpack.c.l.b16 %v205
    %v239 = vpack.c.b16 %v236, %v235
    %v240 = vpack.c.b16 %v238, %v237
    %vm243 = vcmask 261120
    %v245 = vsel %vm243, 0, 0
    %247 = vmatprep.subr.bf16.mxu0 0
    %248 = vmatpush1.bf16.msra.mxu0 %v239
    %249 = vmatprep.subr.bf16.mxu0 0
    %250 = vmatpush1.bf16.msra.mxu0 %v240
    %251 = vmatprep.subr.bf16.mxu0 0
    %252 = vmatpush1.bf16.msra.mxu0 0
    %253 = vmatprep.subr.bf16.mxu0 0
    %254 = vmatpush1.bf16.msra.mxu0 0
    %255 = vmatprep.subr.bf16.mxu0 0
    %256 = vmatpush1.bf16.msra.mxu0 0
    %257 = vmatprep.subr.bf16.mxu0 0
    %258 = vmatpush1.bf16.msra.mxu0 0
    %259 = vmatprep.subr.bf16.mxu0 0
    %260 = vmatpush1.bf16.msra.mxu0 0
    %261 = vmatprep.subr.bf16.mxu0 0
    %262 = vmatpush1.bf16.msra.mxu0 0
    %263 = vmatprep.subr.bf16.mxu0 0
    %264 = vmatpush1.bf16.msra.mxu0 0
    %265 = vmatprep.subr.bf16.mxu0 0
    %266 = vmatpush1.bf16.msra.mxu0 0
    %267 = vmatprep.subr.bf16.mxu0 0
    %268 = vmatpush1.bf16.msra.mxu0 0
    %269 = vmatprep.subr.bf16.mxu0 0
    %270 = vmatpush1.bf16.msra.mxu0 0
    %271 = vmatprep.subr.bf16.mxu0 0
    %272 = vmatpush1.bf16.msra.mxu0 0
    %273 = vmatprep.subr.bf16.mxu0 0
    %274 = vmatpush1.bf16.msra.mxu0 0
    %275 = vmatprep.subr.bf16.mxu0 0
    %276 = vmatpush1.bf16.msra.mxu0 0
    %277 = vmatprep.subr.bf16.mxu0 0
    %278 = vmatpush1.bf16.msra.mxu0 0
    %279 = vmatprep.mubr.bf16.mxu0 0
    %280 = vmatmul.mubr.bf16.gmra.mrb[0].mxu0 %v245
    %v281 = vpop.f32.mrb[0].mxu0
    %v282 = vadd.f32 0.0, %v281
    %v283 = vpop.f32.mrb[0].mxu0
    %v284 = vpop.f32.mrb[0].mxu0
    %v285 = vpop.f32.mrb[0].mxu0
    %286 = vdwg.mxu0
    %v287 = vadd.f32 %v172, %v282
    %v288 = vmul.f32 %v287, 0.5
    %v289 = vsel %vm230, %v287, %v288
    %v290 = vtanh.pop %v289
    %v291 = vmul.f32 %v290, 0.5
    %v292 = vadd.f32 %v291, 0.5
    %v293 = vsel %vm230, %v290, %v292
    %v294 = vmul.f32 %v293, 0.0
    %296 = vrot.lane.b32.xlu0 %v293, 64
    %v297 = vpop.permute.xlu0 %296
    %v299 = vmul.f32 %v293, %v297
    %301 = vrot.lane.b32.xlu0 %v299, 32
    %v302 = vpop.permute.xlu0 %301
    %v304 = vadd.f32 %v294, %v302
    %v305 = vtanh.pop %v304
    %307 = vrot.lane.b32.xlu0 %v305, 64
    %v308 = vpop.permute.xlu0 %307
    %v310 = vmul.f32 %v293, %v308
    %v311 = vpack.c.bf16 %v310, %v310
    %313 = vrot.lane.b32.xlu0 %v311, 32
    %v314 = vpop.permute.xlu0 %313
    %v316 = vsel %vm243, %v314, 0
    %318 = vmatprep.subr.bf16.mxu0 0
    %319 = vmatpush1.bf16.msra.mxu0 %v239
    %320 = vmatprep.subr.bf16.mxu0 0
    %321 = vmatpush1.bf16.msra.mxu0 %v240
    %322 = vmatprep.subr.bf16.mxu0 0
    %323 = vmatpush1.bf16.msra.mxu0 0
    %324 = vmatprep.subr.bf16.mxu0 0
    %325 = vmatpush1.bf16.msra.mxu0 0
    %326 = vmatprep.subr.bf16.mxu0 0
    %327 = vmatpush1.bf16.msra.mxu0 0
    %328 = vmatprep.subr.bf16.mxu0 0
    %329 = vmatpush1.bf16.msra.mxu0 0
    %330 = vmatprep.subr.bf16.mxu0 0
    %331 = vmatpush1.bf16.msra.mxu0 0
    %332 = vmatprep.subr.bf16.mxu0 0
    %333 = vmatpush1.bf16.msra.mxu0 0
    %334 = vmatprep.subr.bf16.mxu0 0
    %335 = vmatpush1.bf16.msra.mxu0 0
    %336 = vmatprep.subr.bf16.mxu0 0
    %337 = vmatpush1.bf16.msra.mxu0 0
    %338 = vmatprep.subr.bf16.mxu0 0
    %339 = vmatpush1.bf16.msra.mxu0 0
    %340 = vmatprep.subr.bf16.mxu0 0
    %341 = vmatpush1.bf16.msra.mxu0 0
    %342 = vmatprep.subr.bf16.mxu0 0
    %343 = vmatpush1.bf16.msra.mxu0 0
    %344 = vmatprep.subr.bf16.mxu0 0
    %345 = vmatpush1.bf16.msra.mxu0 0
    %346 = vmatprep.subr.bf16.mxu0 0
    %347 = vmatpush1.bf16.msra.mxu0 0
    %348 = vmatprep.subr.bf16.mxu0 0
    %349 = vmatpush1.bf16.msra.mxu0 0
    %350 = vmatprep.mubr.bf16.mxu0 0
    %351 = vmatmul.mubr.bf16.gmra.mrb[0].mxu0 %v316
    %v352 = vpop.f32.mrb[0].mxu0
    %v353 = vadd.f32 0.0, %v352
    %v354 = vpop.f32.mrb[0].mxu0
    %v355 = vpop.f32.mrb[0].mxu0
    %v356 = vpop.f32.mrb[0].mxu0
    %357 = vdwg.mxu0
    %v358 = vadd.f32 %v175, %v353
    %v359 = vmul.f32 %v358, 0.5
    %v360 = vsel %vm230, %v358, %v359
    %v361 = vtanh.pop %v360
    %v362 = vmul.f32 %v361, 0.5
    %v363 = vadd.f32 %v362, 0.5
    %v364 = vsel %vm230, %v361, %v363
    %v365 = vmul.f32 %v364, %v304
    %367 = vrot.lane.b32.xlu0 %v364, 64
    %v368 = vpop.permute.xlu0 %367
    %v370 = vmul.f32 %v364, %v368
    %372 = vrot.lane.b32.xlu0 %v370, 32
    %v373 = vpop.permute.xlu0 %372
    %v375 = vadd.f32 %v365, %v373
    %v376 = vtanh.pop %v375
    %378 = vrot.lane.b32.xlu0 %v376, 64
    %v379 = vpop.permute.xlu0 %378
    %v381 = vmul.f32 %v364, %v379
    %v382 = vpack.c.bf16 %v381, %v381
    %384 = vrot.lane.b32.xlu0 %v382, 32
    %v385 = vpop.permute.xlu0 %384
    %v387 = vsel %vm243, %v385, 0
    %389 = vmatprep.subr.bf16.mxu0 0
    %390 = vmatpush1.bf16.msra.mxu0 %v239
    %391 = vmatprep.subr.bf16.mxu0 0
    %392 = vmatpush1.bf16.msra.mxu0 %v240
    %393 = vmatprep.subr.bf16.mxu0 0
    %394 = vmatpush1.bf16.msra.mxu0 0
    %395 = vmatprep.subr.bf16.mxu0 0
    %396 = vmatpush1.bf16.msra.mxu0 0
    %397 = vmatprep.subr.bf16.mxu0 0
    %398 = vmatpush1.bf16.msra.mxu0 0
    %399 = vmatprep.subr.bf16.mxu0 0
    %400 = vmatpush1.bf16.msra.mxu0 0
    %401 = vmatprep.subr.bf16.mxu0 0
    %402 = vmatpush1.bf16.msra.mxu0 0
    %403 = vmatprep.subr.bf16.mxu0 0
    %404 = vmatpush1.bf16.msra.mxu0 0
    %405 = vmatprep.subr.bf16.mxu0 0
    %406 = vmatpush1.bf16.msra.mxu0 0
    %407 = vmatprep.subr.bf16.mxu0 0
    %408 = vmatpush1.bf16.msra.mxu0 0
    %409 = vmatprep.subr.bf16.mxu0 0
    %410 = vmatpush1.bf16.msra.mxu0 0
    %411 = vmatprep.subr.bf16.mxu0 0
    %412 = vmatpush1.bf16.msra.mxu0 0
    %413 = vmatprep.subr.bf16.mxu0 0
    %414 = vmatpush1.bf16.msra.mxu0 0
    %415 = vmatprep.subr.bf16.mxu0 0
    %416 = vmatpush1.bf16.msra.mxu0 0
    %417 = vmatprep.subr.bf16.mxu0 0
    %418 = vmatpush1.bf16.msra.mxu0 0
    %419 = vmatprep.subr.bf16.mxu0 0
    %420 = vmatpush1.bf16.msra.mxu0 0
    %421 = vmatprep.mubr.bf16.mxu0 0
    %422 = vmatmul.mubr.bf16.gmra.mrb[0].mxu0 %v387
    %v423 = vpop.f32.mrb[0].mxu0
    %v424 = vadd.f32 0.0, %v423
    %v425 = vpop.f32.mrb[0].mxu0
    %v426 = vpop.f32.mrb[0].mxu0
    %v427 = vpop.f32.mrb[0].mxu0
    %428 = vdwg.mxu0
    %v429 = vadd.f32 %v180, %v424
    %v430 = vmul.f32 %v429, 0.5
    %v431 = vsel %vm230, %v429, %v430
    %v432 = vtanh.pop %v431
    %v433 = vmul.f32 %v432, 0.5
    %v434 = vadd.f32 %v433, 0.5
    %v435 = vsel %vm230, %v432, %v434
    %v436 = vmul.f32 %v435, %v375
    %438 = vrot.lane.b32.xlu0 %v435, 64
    %v439 = vpop.permute.xlu0 %438
    %v441 = vmul.f32 %v435, %v439
    %443 = vrot.lane.b32.xlu0 %v441, 32
    %v444 = vpop.permute.xlu0 %443
    %v446 = vadd.f32 %v436, %v444
    %v447 = vtanh.pop %v446
    %449 = vrot.lane.b32.xlu0 %v447, 64
    %v450 = vpop.permute.xlu0 %449
    %v452 = vmul.f32 %v435, %v450
    %v453 = vpack.c.bf16 %v452, %v452
    %455 = vrot.lane.b32.xlu0 %v453, 32
    %v456 = vpop.permute.xlu0 %455
    %v458 = vsel %vm243, %v456, 0
    %460 = vmatprep.subr.bf16.mxu0 0
    %461 = vmatpush1.bf16.msra.mxu0 %v239
    %462 = vmatprep.subr.bf16.mxu0 0
    %463 = vmatpush1.bf16.msra.mxu0 %v240
    %464 = vmatprep.subr.bf16.mxu0 0
    %465 = vmatpush1.bf16.msra.mxu0 0
    %466 = vmatprep.subr.bf16.mxu0 0
    %467 = vmatpush1.bf16.msra.mxu0 0
    %468 = vmatprep.subr.bf16.mxu0 0
    %469 = vmatpush1.bf16.msra.mxu0 0
    %470 = vmatprep.subr.bf16.mxu0 0
    %471 = vmatpush1.bf16.msra.mxu0 0
    %472 = vmatprep.subr.bf16.mxu0 0
    %473 = vmatpush1.bf16.msra.mxu0 0
    %474 = vmatprep.subr.bf16.mxu0 0
    %475 = vmatpush1.bf16.msra.mxu0 0
    %476 = vmatprep.subr.bf16.mxu0 0
    %477 = vmatpush1.bf16.msra.mxu0 0
    %478 = vmatprep.subr.bf16.mxu0 0
    %479 = vmatpush1.bf16.msra.mxu0 0
    %480 = vmatprep.subr.bf16.mxu0 0
    %481 = vmatpush1.bf16.msra.mxu0 0
    %482 = vmatprep.subr.bf16.mxu0 0
    %483 = vmatpush1.bf16.msra.mxu0 0
    %484 = vmatprep.subr.bf16.mxu0 0
    %485 = vmatpush1.bf16.msra.mxu0 0
    %486 = vmatprep.subr.bf16.mxu0 0
    %487 = vmatpush1.bf16.msra.mxu0 0
    %488 = vmatprep.subr.bf16.mxu0 0
    %489 = vmatpush1.bf16.msra.mxu0 0
    %490 = vmatprep.subr.bf16.mxu0 0
    %491 = vmatpush1.bf16.msra.mxu0 0
    %492 = vmatprep.mubr.bf16.mxu0 0
    %493 = vmatmul.mubr.bf16.gmra.mrb[0].mxu0 %v458
    %v494 = vpop.f32.mrb[0].mxu0
    %v495 = vadd.f32 0.0, %v494
    %v496 = vpop.f32.mrb[0].mxu0
    %v497 = vpop.f32.mrb[0].mxu0
    %v498 = vpop.f32.mrb[0].mxu0
    %499 = vdwg.mxu0
    %v500 = vadd.f32 %v183, %v495
    %v501 = vmul.f32 %v500, 0.5
    %v502 = vsel %vm230, %v500, %v501
    %v503 = vtanh.pop %v502
    %v504 = vmul.f32 %v503, 0.5
    %v505 = vadd.f32 %v504, 0.5
    %v506 = vsel %vm230, %v503, %v505
    %v507 = vmul.f32 %v506, %v446
    %509 = vrot.lane.b32.xlu0 %v506, 64
    %v510 = vpop.permute.xlu0 %509
    %v512 = vmul.f32 %v506, %v510
    %514 = vrot.lane.b32.xlu0 %v512, 32
    %v515 = vpop.permute.xlu0 %514
    %v517 = vadd.f32 %v507, %v515
    %v518 = vtanh.pop %v517
    %520 = vrot.lane.b32.xlu0 %v518, 64
    %v521 = vpop.permute.xlu0 %520
    %v523 = vmul.f32 %v506, %v521
    %v524 = vpack.c.bf16 %v523, %v523
    %526 = vrot.lane.b32.xlu0 %v524, 32
    %v527 = vpop.permute.xlu0 %526
    %v529 = vsel %vm243, %v527, 0
    %531 = vmatprep.subr.bf16.mxu0 0
    %532 = vmatpush1.bf16.msra.mxu0 %v239
    %533 = vmatprep.subr.bf16.mxu0 0
    %534 = vmatpush1.bf16.msra.mxu0 %v240
    %535 = vmatprep.subr.bf16.mxu0 0
    %536 = vmatpush1.bf16.msra.mxu0 0
    %537 = vmatprep.subr.bf16.mxu0 0
    %538 = vmatpush1.bf16.msra.mxu0 0
    %539 = vmatprep.subr.bf16.mxu0 0
    %540 = vmatpush1.bf16.msra.mxu0 0
    %541 = vmatprep.subr.bf16.mxu0 0
    %542 = vmatpush1.bf16.msra.mxu0 0
    %543 = vmatprep.subr.bf16.mxu0 0
    %544 = vmatpush1.bf16.msra.mxu0 0
    %545 = vmatprep.subr.bf16.mxu0 0
    %546 = vmatpush1.bf16.msra.mxu0 0
    %547 = vmatprep.subr.bf16.mxu0 0
    %548 = vmatpush1.bf16.msra.mxu0 0
    %549 = vmatprep.subr.bf16.mxu0 0
    %550 = vmatpush1.bf16.msra.mxu0 0
    %551 = vmatprep.subr.bf16.mxu0 0
    %552 = vmatpush1.bf16.msra.mxu0 0
    %553 = vmatprep.subr.bf16.mxu0 0
    %554 = vmatpush1.bf16.msra.mxu0 0
    %555 = vmatprep.subr.bf16.mxu0 0
    %556 = vmatpush1.bf16.msra.mxu0 0
    %557 = vmatprep.subr.bf16.mxu0 0
    %558 = vmatpush1.bf16.msra.mxu0 0
    %559 = vmatprep.subr.bf16.mxu0 0
    %560 = vmatpush1.bf16.msra.mxu0 0
    %561 = vmatprep.subr.bf16.mxu0 0
    %562 = vmatpush1.bf16.msra.mxu0 0
    %563 = vmatprep.mubr.bf16.mxu0 0
    %564 = vmatmul.mubr.bf16.gmra.mrb[0].mxu0 %v529
    %v565 = vpop.f32.mrb[0].mxu0
    %v566 = vadd.f32 0.0, %v565
    %v567 = vpop.f32.mrb[0].mxu0
    %v568 = vpop.f32.mrb[0].mxu0
    %v569 = vpop.f32.mrb[0].mxu0
    %570 = vdwg.mxu0
    %v571 = vadd.f32 %v188, %v566
    %v572 = vmul.f32 %v571, 0.5
    %v573 = vsel %vm230, %v571, %v572
    %v574 = vtanh.pop %v573
    %v575 = vmul.f32 %v574, 0.5
    %v576 = vadd.f32 %v575, 0.5
    %v577 = vsel %vm230, %v574, %v576
    %v578 = vmul.f32 %v577, %v517
    %580 = vrot.lane.b32.xlu0 %v577, 64
    %v581 = vpop.permute.xlu0 %580
    %v583 = vmul.f32 %v577, %v581
    %585 = vrot.lane.b32.xlu0 %v583, 32
    %v586 = vpop.permute.xlu0 %585
    %v588 = vadd.f32 %v578, %v586
    %v589 = vtanh.pop %v588
    %591 = vrot.lane.b32.xlu0 %v589, 64
    %v592 = vpop.permute.xlu0 %591
    %v594 = vmul.f32 %v577, %v592
    %v595 = vpack.c.bf16 %v594, %v594
    %597 = vrot.lane.b32.xlu0 %v595, 32
    %v598 = vpop.permute.xlu0 %597
    %v600 = vsel %vm243, %v598, 0
    %602 = vmatprep.subr.bf16.mxu0 0
    %603 = vmatpush1.bf16.msra.mxu0 %v239
    %604 = vmatprep.subr.bf16.mxu0 0
    %605 = vmatpush1.bf16.msra.mxu0 %v240
    %606 = vmatprep.subr.bf16.mxu0 0
    %607 = vmatpush1.bf16.msra.mxu0 0
    %608 = vmatprep.subr.bf16.mxu0 0
    %609 = vmatpush1.bf16.msra.mxu0 0
    %610 = vmatprep.subr.bf16.mxu0 0
    %611 = vmatpush1.bf16.msra.mxu0 0
    %612 = vmatprep.subr.bf16.mxu0 0
    %613 = vmatpush1.bf16.msra.mxu0 0
    %614 = vmatprep.subr.bf16.mxu0 0
    %615 = vmatpush1.bf16.msra.mxu0 0
    %616 = vmatprep.subr.bf16.mxu0 0
    %617 = vmatpush1.bf16.msra.mxu0 0
    %618 = vmatprep.subr.bf16.mxu0 0
    %619 = vmatpush1.bf16.msra.mxu0 0
    %620 = vmatprep.subr.bf16.mxu0 0
    %621 = vmatpush1.bf16.msra.mxu0 0
    %622 = vmatprep.subr.bf16.mxu0 0
    %623 = vmatpush1.bf16.msra.mxu0 0
    %624 = vmatprep.subr.bf16.mxu0 0
    %625 = vmatpush1.bf16.msra.mxu0 0
    %626 = vmatprep.subr.bf16.mxu0 0
    %627 = vmatpush1.bf16.msra.mxu0 0
    %628 = vmatprep.subr.bf16.mxu0 0
    %629 = vmatpush1.bf16.msra.mxu0 0
    %630 = vmatprep.subr.bf16.mxu0 0
    %631 = vmatpush1.bf16.msra.mxu0 0
    %632 = vmatprep.subr.bf16.mxu0 0
    %633 = vmatpush1.bf16.msra.mxu0 0
    %634 = vmatprep.mubr.bf16.mxu0 0
    %635 = vmatmul.mubr.bf16.gmra.mrb[0].mxu0 %v600
    %v636 = vpop.f32.mrb[0].mxu0
    %v637 = vadd.f32 0.0, %v636
    %v638 = vpop.f32.mrb[0].mxu0
    %v639 = vpop.f32.mrb[0].mxu0
    %v640 = vpop.f32.mrb[0].mxu0
    %641 = vdwg.mxu0
    %v642 = vadd.f32 %v191, %v637
    %v643 = vmul.f32 %v642, 0.5
    %v644 = vsel %vm230, %v642, %v643
    %v645 = vtanh.pop %v644
    %v646 = vmul.f32 %v645, 0.5
    %v647 = vadd.f32 %v646, 0.5
    %v648 = vsel %vm230, %v645, %v647
    %v649 = vmul.f32 %v648, %v588
    %651 = vrot.lane.b32.xlu0 %v648, 64
    %v652 = vpop.permute.xlu0 %651
    %v654 = vmul.f32 %v648, %v652
    %656 = vrot.lane.b32.xlu0 %v654, 32
    %v657 = vpop.permute.xlu0 %656
    %v659 = vadd.f32 %v649, %v657
    %v660 = vtanh.pop %v659
    %662 = vrot.lane.b32.xlu0 %v660, 64
    %v663 = vpop.permute.xlu0 %662
    %v665 = vmul.f32 %v648, %v663
    %v666 = vpack.c.bf16 %v665, %v665
    %668 = vrot.lane.b32.xlu0 %v666, 32
    %v669 = vpop.permute.xlu0 %668
    %v671 = vsel %vm243, %v669, 0
    %673 = vmatprep.subr.bf16.mxu0 0
    %674 = vmatpush1.bf16.msra.mxu0 %v239
    %675 = vmatprep.subr.bf16.mxu0 0
    %676 = vmatpush1.bf16.msra.mxu0 %v240
    %677 = vmatprep.subr.bf16.mxu0 0
    %678 = vmatpush1.bf16.msra.mxu0 0
    %679 = vmatprep.subr.bf16.mxu0 0
    %680 = vmatpush1.bf16.msra.mxu0 0
    %681 = vmatprep.subr.bf16.mxu0 0
    %682 = vmatpush1.bf16.msra.mxu0 0
    %683 = vmatprep.subr.bf16.mxu0 0
    %684 = vmatpush1.bf16.msra.mxu0 0
    %685 = vmatprep.subr.bf16.mxu0 0
    %686 = vmatpush1.bf16.msra.mxu0 0
    %687 = vmatprep.subr.bf16.mxu0 0
    %688 = vmatpush1.bf16.msra.mxu0 0
    %689 = vmatprep.subr.bf16.mxu0 0
    %690 = vmatpush1.bf16.msra.mxu0 0
    %691 = vmatprep.subr.bf16.mxu0 0
    %692 = vmatpush1.bf16.msra.mxu0 0
    %693 = vmatprep.subr.bf16.mxu0 0
    %694 = vmatpush1.bf16.msra.mxu0 0
    %695 = vmatprep.subr.bf16.mxu0 0
    %696 = vmatpush1.bf16.msra.mxu0 0
    %697 = vmatprep.subr.bf16.mxu0 0
    %698 = vmatpush1.bf16.msra.mxu0 0
    %699 = vmatprep.subr.bf16.mxu0 0
    %700 = vmatpush1.bf16.msra.mxu0 0
    %701 = vmatprep.subr.bf16.mxu0 0
    %702 = vmatpush1.bf16.msra.mxu0 0
    %703 = vmatprep.subr.bf16.mxu0 0
    %704 = vmatpush1.bf16.msra.mxu0 0
    %705 = vmatprep.mubr.bf16.mxu0 0
    %706 = vmatmul.mubr.bf16.gmra.mrb[0].mxu0 %v671
    %v707 = vpop.f32.mrb[0].mxu0
    %v708 = vadd.f32 0.0, %v707
    %v709 = vpop.f32.mrb[0].mxu0
    %v710 = vpop.f32.mrb[0].mxu0
    %v711 = vpop.f32.mrb[0].mxu0
    %712 = vdwg.mxu0
    %v713 = vadd.f32 %v196, %v708
    %v714 = vmul.f32 %v713, 0.5
    %v715 = vsel %vm230, %v713, %v714
    %v716 = vtanh.pop %v715
    %v717 = vmul.f32 %v716, 0.5
    %v718 = vadd.f32 %v717, 0.5
    %v719 = vsel %vm230, %v716, %v718
    %v720 = vmul.f32 %v719, %v659
    %722 = vrot.lane.b32.xlu0 %v719, 64
    %v723 = vpop.permute.xlu0 %722
    %v725 = vmul.f32 %v719, %v723
    %727 = vrot.lane.b32.xlu0 %v725, 32
    %v728 = vpop.permute.xlu0 %727
    %v730 = vadd.f32 %v720, %v728
    %v731 = vtanh.pop %v730
    %733 = vrot.lane.b32.xlu0 %v731, 64
    %v734 = vpop.permute.xlu0 %733
    %v736 = vmul.f32 %v719, %v734
    %v737 = vpack.c.bf16 %v736, %v736
    %739 = vrot.lane.b32.xlu0 %v737, 32
    %v740 = vpop.permute.xlu0 %739
    %v742 = vsel %vm243, %v740, 0
    %744 = vmatprep.subr.bf16.mxu0 0
    %745 = vmatpush1.bf16.msra.mxu0 %v239
    %746 = vmatprep.subr.bf16.mxu0 0
    %747 = vmatpush1.bf16.msra.mxu0 %v240
    %748 = vmatprep.subr.bf16.mxu0 0
    %749 = vmatpush1.bf16.msra.mxu0 0
    %750 = vmatprep.subr.bf16.mxu0 0
    %751 = vmatpush1.bf16.msra.mxu0 0
    %752 = vmatprep.subr.bf16.mxu0 0
    %753 = vmatpush1.bf16.msra.mxu0 0
    %754 = vmatprep.subr.bf16.mxu0 0
    %755 = vmatpush1.bf16.msra.mxu0 0
    %756 = vmatprep.subr.bf16.mxu0 0
    %757 = vmatpush1.bf16.msra.mxu0 0
    %758 = vmatprep.subr.bf16.mxu0 0
    %759 = vmatpush1.bf16.msra.mxu0 0
    %760 = vmatprep.subr.bf16.mxu0 0
    %761 = vmatpush1.bf16.msra.mxu0 0
    %762 = vmatprep.subr.bf16.mxu0 0
    %763 = vmatpush1.bf16.msra.mxu0 0
    %764 = vmatprep.subr.bf16.mxu0 0
    %765 = vmatpush1.bf16.msra.mxu0 0
    %766 = vmatprep.subr.bf16.mxu0 0
    %767 = vmatpush1.bf16.msra.mxu0 0
    %768 = vmatprep.subr.bf16.mxu0 0
    %769 = vmatpush1.bf16.msra.mxu0 0
    %770 = vmatprep.subr.bf16.mxu0 0
    %771 = vmatpush1.bf16.msra.mxu0 0
    %772 = vmatprep.subr.bf16.mxu0 0
    %773 = vmatpush1.bf16.msra.mxu0 0
    %774 = vmatprep.subr.bf16.mxu0 0
    %775 = vmatpush1.bf16.msra.mxu0 0
    %776 = vmatprep.mubr.bf16.mxu0 0
    %777 = vmatmul.mubr.bf16.gmra.mrb[0].mxu0 %v742
    %v778 = vpop.f32.mrb[0].mxu0
    %v779 = vadd.f32 0.0, %v778
    %v780 = vpop.f32.mrb[0].mxu0
    %v781 = vpop.f32.mrb[0].mxu0
    %v782 = vpop.f32.mrb[0].mxu0
    %783 = vdwg.mxu0
    %v784 = vadd.f32 %v199, %v779
    %v785 = vmul.f32 %v784, 0.5
    %v786 = vsel %vm230, %v784, %v785
    %v787 = vtanh.pop %v786
    %v788 = vmul.f32 %v787, 0.5
    %v789 = vadd.f32 %v788, 0.5
    %v790 = vsel %vm230, %v787, %v789
    %v791 = vmul.f32 %v790, %v730
    %793 = vrot.lane.b32.xlu0 %v790, 64
    %v794 = vpop.permute.xlu0 %793
    %v796 = vmul.f32 %v790, %v794
    %798 = vrot.lane.b32.xlu0 %v796, 32
    %v799 = vpop.permute.xlu0 %798
    %v801 = vadd.f32 %v791, %v799
    %v802 = vtanh.pop %v801
    %804 = vrot.lane.b32.xlu0 %v802, 64
    %v805 = vpop.permute.xlu0 %804
    %v807 = vmul.f32 %v790, %v805
    %v808 = vpack.c.bf16 %v807, %v807
    %v809 = vlaneseq
    %v810 = vshrl.u32 %v809, 7
    %v811 = vsub.s32 0, %v810
    %v812 = vrot.slane %v226, %v811
    %814 = vrot.lane.b32.xlu0 %v808, 32
    %v815 = vpop.permute.xlu0 %814
    %v820 = vunpack.c.l.b16 %v206
    %v821 = vunpack.c.l.b16 %v207
    %v822 = vunpack.c.l.b16 %v208
    %v823 = vunpack.c.l.b16 %v209
    %v824 = vpack.c.b16 %v821, %v820
    %v825 = vpack.c.b16 %v823, %v822
    %v829 = vsel %vm243, %v815, 0
    %831 = vmatprep.subr.bf16.mxu0 0
    %832 = vmatpush1.bf16.msra.mxu0 %v824
    %833 = vmatprep.subr.bf16.mxu0 0
    %834 = vmatpush1.bf16.msra.mxu0 %v825
    %835 = vmatprep.subr.bf16.mxu0 0
    %836 = vmatpush1.bf16.msra.mxu0 0
    %837 = vmatprep.subr.bf16.mxu0 0
    %838 = vmatpush1.bf16.msra.mxu0 0
    %839 = vmatprep.subr.bf16.mxu0 0
    %840 = vmatpush1.bf16.msra.mxu0 0
    %841 = vmatprep.subr.bf16.mxu0 0
    %842 = vmatpush1.bf16.msra.mxu0 0
    %843 = vmatprep.subr.bf16.mxu0 0
    %844 = vmatpush1.bf16.msra.mxu0 0
    %845 = vmatprep.subr.bf16.mxu0 0
    %846 = vmatpush1.bf16.msra.mxu0 0
    %847 = vmatprep.subr.bf16.mxu0 0
    %848 = vmatpush1.bf16.msra.mxu0 0
    %849 = vmatprep.subr.bf16.mxu0 0
    %850 = vmatpush1.bf16.msra.mxu0 0
    %851 = vmatprep.subr.bf16.mxu0 0
    %852 = vmatpush1.bf16.msra.mxu0 0
    %853 = vmatprep.subr.bf16.mxu0 0
    %854 = vmatpush1.bf16.msra.mxu0 0
    %855 = vmatprep.subr.bf16.mxu0 0
    %856 = vmatpush1.bf16.msra.mxu0 0
    %857 = vmatprep.subr.bf16.mxu0 0
    %858 = vmatpush1.bf16.msra.mxu0 0
    %859 = vmatprep.subr.bf16.mxu0 0
    %860 = vmatpush1.bf16.msra.mxu0 0
    %861 = vmatprep.subr.bf16.mxu0 0
    %862 = vmatpush1.bf16.msra.mxu0 0
    %863 = vmatprep.mubr.bf16.mxu0 0
    %864 = vmatmul.mubr.bf16.gmra.mrb[0].mxu0 %v829
    %v865 = vpop.f32.mrb[0].mxu0
    %v866 = vadd.f32 %v812, %v865
    %v867 = vpop.f32.mrb[0].mxu0
    %v868 = vpop.f32.mrb[0].mxu0
    %v869 = vpop.f32.mrb[0].mxu0
    %870 = vdwg.mxu0
    %v871 = vmax.f32 %v866, 0.0
    %v872 = vpack.c.bf16 %v871, %v871
    %v873 = vlaneseq
    %v874 = vshrl.u32 %v873, 7
    %v875 = vsub.s32 0, %v874
    %v876 = vrot.slane %v227, %v875
    %v893 = vunpack.c.l.b16 %v210
    %v894 = vunpack.c.l.b16 %v211
    %v895 = vunpack.c.l.b16 %v212
    %v896 = vunpack.c.l.b16 %v213
    %v897 = vunpack.c.l.b16 %v214
    %v898 = vunpack.c.l.b16 %v215
    %v899 = vunpack.c.l.b16 %v216
    %v900 = vunpack.c.l.b16 %v217
    %v901 = vunpack.c.l.b16 %v218
    %v902 = vunpack.c.l.b16 %v219
    %v903 = vunpack.c.l.b16 %v220
    %v904 = vunpack.c.l.b16 %v221
    %v905 = vunpack.c.l.b16 %v222
    %v906 = vunpack.c.l.b16 %v223
    %v907 = vunpack.c.l.b16 %v224
    %v908 = vunpack.c.l.b16 %v225
    %v909 = vpack.c.b16 %v894, %v893
    %v910 = vpack.c.b16 %v896, %v895
    %v911 = vpack.c.b16 %v898, %v897
    %v912 = vpack.c.b16 %v900, %v899
    %v913 = vpack.c.b16 %v902, %v901
    %v914 = vpack.c.b16 %v904, %v903
    %v915 = vpack.c.b16 %v906, %v905
    %v916 = vpack.c.b16 %v908, %v907
    %925 = vmatprep.subr.bf16.mxu0 0
    %926 = vmatpush1.bf16.msra.mxu0 %v909
    %927 = vmatprep.subr.bf16.mxu0 0
    %928 = vmatpush1.bf16.msra.mxu0 %v910
    %929 = vmatprep.subr.bf16.mxu0 0
    %930 = vmatpush1.bf16.msra.mxu0 %v911
    %931 = vmatprep.subr.bf16.mxu0 0
    %932 = vmatpush1.bf16.msra.mxu0 %v912
    %933 = vmatprep.subr.bf16.mxu0 0
    %934 = vmatpush1.bf16.msra.mxu0 %v913
    %935 = vmatprep.subr.bf16.mxu0 0
    %936 = vmatpush1.bf16.msra.mxu0 %v914
    %937 = vmatprep.subr.bf16.mxu0 0
    %938 = vmatpush1.bf16.msra.mxu0 %v915
    %939 = vmatprep.subr.bf16.mxu0 0
    %940 = vmatpush1.bf16.msra.mxu0 %v916
    %941 = vmatprep.subr.bf16.mxu0 0
    %942 = vmatpush1.bf16.msra.mxu0 0
    %943 = vmatprep.subr.bf16.mxu0 0
    %944 = vmatpush1.bf16.msra.mxu0 0
    %945 = vmatprep.subr.bf16.mxu0 0
    %946 = vmatpush1.bf16.msra.mxu0 0
    %947 = vmatprep.subr.bf16.mxu0 0
    %948 = vmatpush1.bf16.msra.mxu0 0
    %949 = vmatprep.subr.bf16.mxu0 0
    %950 = vmatpush1.bf16.msra.mxu0 0
    %951 = vmatprep.subr.bf16.mxu0 0
    %952 = vmatpush1.bf16.msra.mxu0 0
    %953 = vmatprep.subr.bf16.mxu0 0
    %954 = vmatpush1.bf16.msra.mxu0 0
    %955 = vmatprep.subr.bf16.mxu0 0
    %956 = vmatpush1.bf16.msra.mxu0 0
    %957 = vmatprep.mubr.bf16.mxu0 0
    %958 = vmatmul.mubr.bf16.gmra.mrb[0].mxu0 %v872
    %v959 = vpop.f32.mrb[0].mxu0
    %v960 = vadd.f32 %v876, %v959
    %v961 = vpop.f32.mrb[0].mxu0
    %v962 = vpop.f32.mrb[0].mxu0
    %v963 = vpop.f32.mrb[0].mxu0
    %964 = vdwg.mxu0
    %965 = vst [vmem:[#allocation5] sm:$0xff] %v960
    // Predicated region
    $region18: #{tpu_custom_call.1} parent=1 // pred_check
      _
    $region19: #{tpu_custom_call.1} parent=1 // pred_check_branch
      %967 = sbr.rel (0) target = $region21
    $region20: #{tpu_custom_call.1} parent=1 // pred_region
      %s969 = ssub.s32 128, 128
      %970 = vsyncadd [#allocation4], %s969
      %s972 = sshll.u32 [#allocation5], 4
      %s973 = int_to_ptr.vmem [resolvable:$true] %s972
      %975 = dma.vmem_to_hbm [thread:$0]  %s973, 128, %s3, [#allocation4]
    $region21: #{tpu_custom_call.1} parent=1 // pred_fallthru
      _
    // Predicated region
    $region22: #{tpu_custom_call.1} parent=1 // pred_check
      _
    $region23: #{tpu_custom_call.1} parent=1 // pred_check_branch
      %977 = sbr.rel (0) target = $region25
    $region24: #{tpu_custom_call.1} parent=1 // pred_region
      %978 = dma.done [#allocation4], 128
    $region25: #{tpu_custom_call.1} parent=1 // pred_fallthru
      _
    %979 = vsyncpa [#allocation3], 1
    %980 = vsyncpa [#allocation4], 1

</llo_original>
